<compile_context>
chip_gen: v7x
topology: tpu7x:2x2x1
jax: 0.10.0
libtpu: 0.0.40
codegen_flags: <defaults>
</compile_context>

<pallas_src>
import math
import jax
import jax.numpy as jnp
from jax.experimental import pallas as pl
from jax.experimental.pallas import tpu as pltpu

IN_DIM = 1000
HID_DIM = 100
OUT_DIM = 10
HID_PAD = 128     # hidden 100 -> 128 lanes (MXU/VPU friendly, zero-padded)
OUT_PAD = 128     # layer2 weight padded to 128 lanes; result sliced to 10 before store
TB_CAP = 4096     # bf16 x: 2 x 8 MiB double-buffered -> fits the 32 MiB scoped default


def tiny_model_kernel(x_ref, w1_ref, b1_ref, w2_ref, b2_ref, o_ref):
    # layer1: (TB, 1000) bf16 @ (1000, 128) bf16 -> f32 accumulate on the MXU
    h = jnp.dot(x_ref[...], w1_ref[...], preferred_element_type=jnp.float32)
    # bias + ReLU in f32 on the VPU (padded hidden lanes stay exactly 0)
    h = jnp.maximum(h + b1_ref[...], 0.0)
    # layer2: (TB, 128) bf16 @ (128, 128) bf16 -> f32 accumulate
    y = jnp.dot(h.astype(jnp.bfloat16), w2_ref[...],
                preferred_element_type=jnp.float32)
    y = y + b2_ref[...]
    # Slim writeback: only the 10 real output lanes are stored (block last dim == 10).
    o_ref[...] = y[:, :OUT_DIM].astype(o_ref.dtype)


def prepare_params(w1, b1, w2, b2):
    """One-time prep: transpose to [in, out], zero-pad feature dims to 128 lanes,
    cast weights to bf16 (biases stay f32).  Do NOT call this per forward."""
    w1_p = jnp.zeros((IN_DIM, HID_PAD), jnp.bfloat16)
    w1_p = w1_p.at[:, :HID_DIM].set(w1.T.astype(jnp.bfloat16))         # (1000, 128)
    b1_p = jnp.zeros((1, HID_PAD), jnp.float32).at[:, :HID_DIM].set(b1)
    w2_p = jnp.zeros((HID_PAD, OUT_PAD), jnp.bfloat16)
    w2_p = w2_p.at[:HID_DIM, :OUT_DIM].set(w2.T.astype(jnp.bfloat16))   # (128, 128)
    b2_p = jnp.zeros((1, OUT_PAD), jnp.float32).at[:, :OUT_DIM].set(b2)
    return w1_p, b1_p, w2_p, b2_p


def _pick_tb(batch):
    """Batch tile: >= 2 grid steps whenever possible (v7x dual-TC + pipelining),
    multiple of 8, capped so double-buffered bf16 x tiles stay well inside VMEM."""
    if batch <= 8:
        return batch                       # single full tile (block == full dim)
    tb = min(pl.cdiv(batch, 2), TB_CAP)    # aim for at least 2 steps
    tb = ((tb + 7) // 8) * 8               # multiple of 8 (sublane constraint)
    return tb


def tiny_model_forward(x, w1_p, b1_p, w2_p, b2_p):
    """x: (B, 1000), any float dtype (cast to bf16 here if needed -- cheaper still is
    for the producer to hand us bf16 directly).  Returns (B, 10) f32."""
    batch = x.shape[0]
    if x.dtype != jnp.bfloat16:
        x = x.astype(jnp.bfloat16)         # one-time cast; halves x DMA bytes per tile

    tb = _pick_tb(batch)
    grid = (pl.cdiv(batch, tb),)

    return pl.pallas_call(
        tiny_model_kernel,
        out_shape=jax.ShapeDtypeStruct((batch, OUT_DIM), jnp.float32),  # dtype pinned f32
        grid_spec=pltpu.PrefetchScalarGridSpec(
            num_scalar_prefetch=0,
            grid=grid,
            in_specs=[
                pl.BlockSpec((tb, IN_DIM), lambda i: (i, 0)),         # x: tiled over batch
                pl.BlockSpec((IN_DIM, HID_PAD), lambda i: (0, 0)),    # w1: resident
                pl.BlockSpec((1, HID_PAD), lambda i: (0, 0)),         # b1: resident
                pl.BlockSpec((HID_PAD, OUT_PAD), lambda i: (0, 0)),   # w2: resident
                pl.BlockSpec((1, OUT_PAD), lambda i: (0, 0)),         # b2: resident
            ],
            out_specs=pl.BlockSpec((tb, OUT_DIM), lambda i: (i, 0)),  # (B, 10) directly
        ),
        compiler_params=pltpu.CompilerParams(
            dimension_semantics=("parallel",),   # shard batch tiles across TCs (v7x)
        ),
    )(x, w1_p, b1_p, w2_p, b2_p)


def init_params(key):
    """Deterministic init matching torch.nn.Linear defaults:
    U(-1/sqrt(fan_in), 1/sqrt(fan_in)) for both weight and bias."""
    k1, k2, k3, k4 = jax.random.split(key, 4)
    bound1 = 1.0 / math.sqrt(float(IN_DIM))
    w1 = jax.random.uniform(k1, (HID_DIM, IN_DIM), jnp.float32, -bound1, bound1)
    b1 = jax.random.uniform(k2, (HID_DIM,), jnp.float32, -bound1, bound1)
    bound2 = 1.0 / math.sqrt(float(HID_DIM))
    w2 = jax.random.uniform(k3, (OUT_DIM, HID_DIM), jnp.float32, -bound2, bound2)
    b2 = jax.random.uniform(k4, (OUT_DIM,), jnp.float32, -bound2, bound2)
    return w1, b1, w2, b2


if __name__ == "__main__":
    key = jax.random.PRNGKey(0)
    k_x, k_p = jax.random.split(key)

    w1, b1, w2, b2 = init_params(k_p)
    # One-time parameter prep (transpose / pad / bf16-cast), outside the hot path.
    w1_p, b1_p, w2_p, b2_p = prepare_params(w1, b1, w2, b2)

    def ref_forward(xx):
        # Pure-JAX f32 reference of the original TinyModel forward.
        return jnp.maximum(xx @ w1.T + b1, 0.0) @ w2.T + b2

    # Case 1: B=16 -> TB=8, grid=(2,): exercises pipelining / dual-TC sharding path.
    B1 = 16
    x1 = jax.random.normal(k_x, (B1, IN_DIM), jnp.float32)
    y1 = jax.block_until_ready(tiny_model_forward(x1, w1_p, b1_p, w2_p, b2_p))
    assert y1.shape == (B1, OUT_DIM) and y1.dtype == jnp.float32
    # bf16 MXU inputs with f32 accumulation -> loosened tolerance vs the f32 reference.
    assert jnp.allclose(y1, ref_forward(x1), atol=2e-2, rtol=2e-2)

    # Case 2: tiny batch (B=4) -> single full tile path.
    B2 = 4
    x2 = jax.random.normal(jax.random.PRNGKey(1), (B2, IN_DIM), jnp.float32)
    y2 = jax.block_until_ready(tiny_model_forward(x2, w1_p, b1_p, w2_p, b2_p))
    assert y2.shape == (B2, OUT_DIM) and y2.dtype == jnp.float32
    assert jnp.allclose(y2, ref_forward(x2), atol=2e-2, rtol=2e-2)

    print("KERNEL_OK")
</pallas_src>

<mosaic_0001>
module attributes {stable_mosaic.version = 11 : i64} {
  func.func @tiny_model_kernel(%arg0: i32, %arg1: memref<8x1000xbf16, #tpu.memory_space<vmem>>, %arg2: memref<1000x128xbf16, #tpu.memory_space<vmem>>, %arg3: memref<1x128xf32, #tpu.memory_space<vmem>>, %arg4: memref<128x128xbf16, #tpu.memory_space<vmem>>, %arg5: memref<1x128xf32, #tpu.memory_space<vmem>>, %arg6: memref<8x10xf32, #tpu.memory_space<vmem>>) attributes {dimension_semantics = [#tpu.dimension_semantics<parallel>], iteration_bounds = array<i64: 2>, scalar_prefetch = 0 : i64, scratch_operands = 0 : i64, tpu.core_type = #tpu.core_type<tc>, window_params = [{transform_indices = @transform_0, window_bounds = array<i64: 8, 1000>}, {pipeline_mode = #tpu.pipeline_mode<synchronous>, transform_indices = @transform_1, window_bounds = array<i64: 1000, 128>}, {pipeline_mode = #tpu.pipeline_mode<synchronous>, transform_indices = @transform_2, window_bounds = array<i64: 1, 128>}, {pipeline_mode = #tpu.pipeline_mode<synchronous>, transform_indices = @transform_3, window_bounds = array<i64: 128, 128>}, {pipeline_mode = #tpu.pipeline_mode<synchronous>, transform_indices = @transform_4, window_bounds = array<i64: 1, 128>}, {transform_indices = @transform_5, window_bounds = array<i64: 8, 10>}]} {
    %c0 = arith.constant 0 : index
    %c0_0 = arith.constant 0 : index
    %0 = vector.load %arg1[%c0, %c0_0] : memref<8x1000xbf16, #tpu.memory_space<vmem>>, vector<8x1000xbf16>
    %c0_1 = arith.constant 0 : index
    %c0_2 = arith.constant 0 : index
    %1 = vector.load %arg2[%c0_1, %c0_2] : memref<1000x128xbf16, #tpu.memory_space<vmem>>, vector<1000x128xbf16>
    %cst = arith.constant dense<0.000000e+00> : vector<8x128xf32>
    %2 = tpu.matmul %0, %1, %cst {dimension_numbers = #tpu.dot_dimension_numbers<[1], [0], [0], [1], [0, 0, 1, 1], [], []>} : vector<8x1000xbf16>, vector<1000x128xbf16>, vector<8x128xf32> -> vector<8x128xf32>
    %c0_3 = arith.constant 0 : index
    %c0_4 = arith.constant 0 : index
    %3 = vector.load %arg3[%c0_3, %c0_4] : memref<1x128xf32, #tpu.memory_space<vmem>>, vector<1x128xf32>
    %4 = vector.broadcast %3 : vector<1x128xf32> to vector<8x128xf32>
    %5 = arith.addf %2, %4 : vector<8x128xf32>
    %cst_5 = arith.constant 0.000000e+00 : f32
    %6 = vector.broadcast %cst_5 : f32 to vector<8x128xf32>
    %7 = arith.maximumf %5, %6 : vector<8x128xf32>
    %8 = arith.truncf %7 : vector<8x128xf32> to vector<8x128xbf16>
    %c0_6 = arith.constant 0 : index
    %c0_7 = arith.constant 0 : index
    %9 = vector.load %arg4[%c0_6, %c0_7] : memref<128x128xbf16, #tpu.memory_space<vmem>>, vector<128x128xbf16>
    %cst_8 = arith.constant dense<0.000000e+00> : vector<8x128xf32>
    %10 = tpu.matmul %8, %9, %cst_8 {dimension_numbers = #tpu.dot_dimension_numbers<[1], [0], [0], [1], [0, 0, 1, 1], [], []>} : vector<8x128xbf16>, vector<128x128xbf16>, vector<8x128xf32> -> vector<8x128xf32>
    %c0_9 = arith.constant 0 : index
    %c0_10 = arith.constant 0 : index
    %11 = vector.load %arg5[%c0_9, %c0_10] : memref<1x128xf32, #tpu.memory_space<vmem>>, vector<1x128xf32>
    %12 = vector.broadcast %11 : vector<1x128xf32> to vector<8x128xf32>
    %13 = arith.addf %10, %12 : vector<8x128xf32>
    %14 = vector.extract_strided_slice %13 {offsets = [0, 0], sizes = [8, 10], strides = [1, 1]} : vector<8x128xf32> to vector<8x10xf32>
    %c0_11 = arith.constant 0 : index
    %c0_12 = arith.constant 0 : index
    %15 = vector.load %arg6[%c0_11, %c0_12] : memref<8x10xf32, #tpu.memory_space<vmem>>, vector<8x10xf32>
    tpu.vector_store %arg6[%c0_11, %c0_12], %14 {strides = array<i32>} : memref<8x10xf32, #tpu.memory_space<vmem>>, vector<8x10xf32>,
    return
  }
  func.func @transform_0(%arg0: i32) -> (i32, i32) {
    %c0_i32 = arith.constant 0 : i32
    %c0_i32_0 = arith.constant 0 : i32
    return %arg0, %c0_i32 : i32, i32
  }
  func.func @transform_1(%arg0: i32) -> (i32, i32) {
    %c0_i32 = arith.constant 0 : i32
    %c0_i32_0 = arith.constant 0 : i32
    %c0_i32_1 = arith.constant 0 : i32
    return %c0_i32, %c0_i32_0 : i32, i32
  }
  func.func @transform_2(%arg0: i32) -> (i32, i32) {
    %c0_i32 = arith.constant 0 : i32
    %c0_i32_0 = arith.constant 0 : i32
    %c0_i32_1 = arith.constant 0 : i32
    return %c0_i32, %c0_i32_0 : i32, i32
  }
  func.func @transform_3(%arg0: i32) -> (i32, i32) {
    %c0_i32 = arith.constant 0 : i32
    %c0_i32_0 = arith.constant 0 : i32
    %c0_i32_1 = arith.constant 0 : i32
    return %c0_i32, %c0_i32_0 : i32, i32
  }
  func.func @transform_4(%arg0: i32) -> (i32, i32) {
    %c0_i32 = arith.constant 0 : i32
    %c0_i32_0 = arith.constant 0 : i32
    %c0_i32_1 = arith.constant 0 : i32
    return %c0_i32, %c0_i32_0 : i32, i32
  }
  func.func @transform_5(%arg0: i32) -> (i32, i32) {
    %c0_i32 = arith.constant 0 : i32
    %c0_i32_0 = arith.constant 0 : i32
    return %arg0, %c0_i32 : i32, i32
  }
}

</mosaic_0001>

<llo_original>
// kernel: tpu_custom_call.1
$region0: #{tpu_custom_call.1}
  #allocation0 [shape = 'u32[]', space=smem, size = 0x4, offset = 0x4, fixed_abs, tag = 'smem constant byte address 0x4 - core index']
  #allocation1 [shape = 'u32[144,128]{1,0:T(1,128)}', space=vmem, size = 0x12000, scoped, tag = 'internal scratch']
  %s0 = inlined_call_operand.hbm [shape: bf16[16,1000], index: 0, kind: input, shape index: {}]
  %s1 = inlined_call_operand.hbm [shape: bf16[1000,128], index: 1, kind: input, shape index: {}]
  %s2 = inlined_call_operand.vmem [shape: f32[1,128], index: 2, kind: input, shape index: {}]
  %s3 = inlined_call_operand.hbm [shape: bf16[128,128], index: 3, kind: input, shape index: {}]
  %s4 = inlined_call_operand.vmem [shape: f32[1,128], index: 4, kind: input, shape index: {}]
  %s5 = inlined_call_operand.hbm [shape: f32[16,10], index: 5, kind: output, shape index: {}]
  %s6 = sld [smem:[#allocation0]]
  $region65: #{tpu_custom_call.1} parent=0
    _
  %s8 = ssub.s32 1, %s6
  %s9 = scalar_select 0, %s8, %s6
  $region1: #{tpu_custom_call.1} parent=0
    #allocation2 [shape = 'u8[32768]{0}', space=vmem, size = 0x8000, scoped, tag = 'input window, operand 0']
    #allocation3 [shape = 's32[2]{0}', space=sflag, size = 0x8, scoped, tag = 'scoped memory for tpu_custom_call.1']
    #allocation4 [shape = 's32[2]{0}', space=sflag, size = 0x8, scoped, tag = 'scoped memory for tpu_custom_call.1']
    #allocation5 [shape = 'u8[256000]{0}', space=vmem, size = 0x3e800, scoped, tag = 'input window, operand 1, single buffered']
    #allocation6 [shape = 's32[1]{0}', space=sflag, size = 0x4, scoped, tag = 'scoped memory for tpu_custom_call.1']
    #allocation7 [shape = 'u8[32768]{0}', space=vmem, size = 0x8000, scoped, tag = 'input window, operand 3, single buffered']
    #allocation8 [shape = 'u8[8192]{0}', space=vmem, size = 0x2000, scoped, tag = 'output window, operand 0']
    %10 = vsyncpa [#allocation3], 0
    %s11 = scalar_lea.sflag [#allocation3], 1
    %12 = vsyncpa %s11, 0
    %13 = vsyncpa [#allocation6], 0
    %14 = vsyncpa [#allocation4], 0
    %s15 = scalar_lea.sflag [#allocation4], 1
    %16 = vsyncpa %s15, 0
    loop: start=0, step=1, limit=4
    $region2: #{tpu_custom_call.1} parent=1 // loop_pre_header
      _
    $region3: #{tpu_custom_call.1} parent=1 // loop_header
      %s18 = sphi 0, %s22
      %p19 = scmp.ge.s32.totalorder %s18, 4
      %s28 = sphi 0, %s30
      %s31 = sphi 0, %s28
      %s32 = sphi 0, %s31
      %s48 = sphi 0, %s32
      %s52 = sphi 0, %s52
      %s54 = sphi 0, %s52
      %s55 = sphi 0, %s54
      %s69 = sphi 0, %s55
      %s73 = sphi 0, %s73
      %s75 = sphi 0, %s73
      %s76 = sphi 0, %s75
      %s90 = sphi 0, %s76
      %s94 = sphi 0, %s94
      %s96 = sphi 0, %s94
      %s97 = sphi 0, %s96
      %s111 = sphi 0, %s97
      %s115 = sphi 0, %s115
      %s117 = sphi 0, %s115
      %s118 = sphi 0, %s117
      %s132 = sphi 0, %s118
      %s138 = sphi 0, %s140
      %s141 = sphi 0, %s138
      %s142 = sphi 0, %s141
      %s158 = sphi 0, %s142
    $region4: #{tpu_custom_call.1} parent=1 // loop_header_branch
      %21 = sbr.rel (%p19) target = $region8
    $region5: #{tpu_custom_call.1} parent=1 // loop_body
      %s23 = ssub.s32 %s18, 1
      %s24 = ssub.s32 %s18, 2
      %s25 = sadd.s32 %s18, 1
      %s26 = ssub.s32 %s18, %s25
      %p27 = scmp.eq.s32.totalorder %s26, 0
      %s29 = sadd.s32 %s28, 1
      %s30 = scalar_select %p27, %s28, %s29
      %p33 = pneg %p27
      %p34 = scmp.eq.s32.totalorder %s18, 1
      %p35 = por %p33, %p34
      %p36 = scmp.ne.s32.totalorder %s28, %s31
      %p37 = scmp.eq.s32.totalorder %s18, 0
      %p38 = por %p36, %p37
      %p39 = scmp.ne.s32.totalorder %s28, %s31
      %p40 = scmp.eq.s32.totalorder %s23, 1
      %p41 = por %p39, %p40
      %p42 = scmp.ne.s32.totalorder %s31, %s32
      %p43 = scmp.eq.s32.totalorder %s23, 0
      %p44 = por %p42, %p43
      %p45 = scmp.ne.s32.totalorder %s31, %s32
      %p46 = scmp.eq.s32.totalorder %s24, 1
      %p47 = por %p45, %p46
      %p49 = scmp.ne.s32.totalorder %s32, %s48
      %p50 = scmp.eq.s32.totalorder %s24, 0
      %p51 = por %p49, %p50
      %s53 = sadd.s32 %s52, 1
      %p56 = scmp.eq.s32.totalorder %s18, 1
      %p57 = scmp.ne.s32.totalorder %s52, %s54
      %p58 = scmp.eq.s32.totalorder %s18, 0
      %p59 = por %p57, %p58
      %p60 = scmp.ne.s32.totalorder %s52, %s54
      %p61 = scmp.eq.s32.totalorder %s23, 1
      %p62 = por %p60, %p61
      %p63 = scmp.ne.s32.totalorder %s54, %s55
      %p64 = scmp.eq.s32.totalorder %s23, 0
      %p65 = por %p63, %p64
      %p66 = scmp.ne.s32.totalorder %s54, %s55
      %p67 = scmp.eq.s32.totalorder %s24, 1
      %p68 = por %p66, %p67
      %p70 = scmp.ne.s32.totalorder %s55, %s69
      %p71 = scmp.eq.s32.totalorder %s24, 0
      %p72 = por %p70, %p71
      %s74 = sadd.s32 %s73, 1
      %p77 = scmp.eq.s32.totalorder %s18, 1
      %p78 = scmp.ne.s32.totalorder %s73, %s75
      %p79 = scmp.eq.s32.totalorder %s18, 0
      %p80 = por %p78, %p79
      %p81 = scmp.ne.s32.totalorder %s73, %s75
      %p82 = scmp.eq.s32.totalorder %s23, 1
      %p83 = por %p81, %p82
      %p84 = scmp.ne.s32.totalorder %s75, %s76
      %p85 = scmp.eq.s32.totalorder %s23, 0
      %p86 = por %p84, %p85
      %p87 = scmp.ne.s32.totalorder %s75, %s76
      %p88 = scmp.eq.s32.totalorder %s24, 1
      %p89 = por %p87, %p88
      %p91 = scmp.ne.s32.totalorder %s76, %s90
      %p92 = scmp.eq.s32.totalorder %s24, 0
      %p93 = por %p91, %p92
      %s95 = sadd.s32 %s94, 1
      %p98 = scmp.eq.s32.totalorder %s18, 1
      %p99 = scmp.ne.s32.totalorder %s94, %s96
      %p100 = scmp.eq.s32.totalorder %s18, 0
      %p101 = por %p99, %p100
      %p102 = scmp.ne.s32.totalorder %s94, %s96
      %p103 = scmp.eq.s32.totalorder %s23, 1
      %p104 = por %p102, %p103
      %p105 = scmp.ne.s32.totalorder %s96, %s97
      %p106 = scmp.eq.s32.totalorder %s23, 0
      %p107 = por %p105, %p106
      %p108 = scmp.ne.s32.totalorder %s96, %s97
      %p109 = scmp.eq.s32.totalorder %s24, 1
      %p110 = por %p108, %p109
      %p112 = scmp.ne.s32.totalorder %s97, %s111
      %p113 = scmp.eq.s32.totalorder %s24, 0
      %p114 = por %p112, %p113
      %s116 = sadd.s32 %s115, 1
      %p119 = scmp.eq.s32.totalorder %s18, 1
      %p120 = scmp.ne.s32.totalorder %s115, %s117
      %p121 = scmp.eq.s32.totalorder %s18, 0
      %p122 = por %p120, %p121
      %p123 = scmp.ne.s32.totalorder %s115, %s117
      %p124 = scmp.eq.s32.totalorder %s23, 1
      %p125 = por %p123, %p124
      %p126 = scmp.ne.s32.totalorder %s117, %s118
      %p127 = scmp.eq.s32.totalorder %s23, 0
      %p128 = por %p126, %p127
      %p129 = scmp.ne.s32.totalorder %s117, %s118
      %p130 = scmp.eq.s32.totalorder %s24, 1
      %p131 = por %p129, %p130
      %p133 = scmp.ne.s32.totalorder %s118, %s132
      %p134 = scmp.eq.s32.totalorder %s24, 0
      %p135 = por %p133, %p134
      %s136 = ssub.s32 %s18, %s25
      %p137 = scmp.eq.s32.totalorder %s136, 0
      %s139 = sadd.s32 %s138, 1
      %s140 = scalar_select %p137, %s138, %s139
      %p143 = pneg %p137
      %p144 = scmp.eq.s32.totalorder %s18, 1
      %p145 = por %p143, %p144
      %p146 = scmp.ne.s32.totalorder %s138, %s141
      %p147 = scmp.eq.s32.totalorder %s18, 0
      %p148 = por %p146, %p147
      %p149 = scmp.ne.s32.totalorder %s138, %s141
      %p150 = scmp.eq.s32.totalorder %s23, 1
      %p151 = por %p149, %p150
      %p152 = scmp.ne.s32.totalorder %s141, %s142
      %p153 = scmp.eq.s32.totalorder %s23, 0
      %p154 = por %p152, %p153
      %p155 = scmp.ne.s32.totalorder %s141, %s142
      %p156 = scmp.eq.s32.totalorder %s24, 1
      %p157 = por %p155, %p156
      %p159 = scmp.ne.s32.totalorder %s142, %s158
      %p160 = scmp.eq.s32.totalorder %s24, 0
      %p161 = por %p159, %p160
      %p162 = scmp.le.s32.totalorder 1, %s18
      %p163 = scmp.lt.s32.totalorder %s18, 3
      %p164 = pnand %p162, %p163
      %p165 = pneg %p164
      // Predicated region
      $region9: #{tpu_custom_call.1} parent=5 // pred_check
        _
      $region10: #{tpu_custom_call.1} parent=5 // pred_check_branch
        %167 = sbr.rel (%p164) target = $region12
      $region11: #{tpu_custom_call.1} parent=5 // pred_region
        %s168 = ssub.s32 %s18, 1
        // Predicated region
        $region13: #{tpu_custom_call.1} parent=11 // pred_check
          %p169 = pneg %p65
        $region14: #{tpu_custom_call.1} parent=11 // pred_check_branch
          %171 = sbr.rel (%p169) target = $region16
        $region15: #{tpu_custom_call.1} parent=11 // pred_region
          %s173 = ssub.s32 8000, 8000
          %174 = vsyncadd [#allocation6], %s173
          %s175 = sshll.u32 [#allocation5], 4
          %s176 = int_to_ptr.vmem [resolvable:$true] %s175
          %181 = dma.hbm_to_vmem [thread:$0]  %s1, 8000, %s176, [#allocation6], 64, 64, 4
        $region16: #{tpu_custom_call.1} parent=11 // pred_fallthru
          _
        // Predicated region
        $region17: #{tpu_custom_call.1} parent=11 // pred_check
          %p182 = pneg %p86
        $region18: #{tpu_custom_call.1} parent=11 // pred_check_branch
          %184 = sbr.rel (%p182) target = $region20
        $region19: #{tpu_custom_call.1} parent=11 // pred_region
          _
        $region20: #{tpu_custom_call.1} parent=11 // pred_fallthru
          _
        // Predicated region
        $region21: #{tpu_custom_call.1} parent=11 // pred_check
          %p185 = pneg %p107
        $region22: #{tpu_custom_call.1} parent=11 // pred_check_branch
          %187 = sbr.rel (%p185) target = $region24
        $region23: #{tpu_custom_call.1} parent=11 // pred_region
          %s189 = ssub.s32 1024, 1024
          %190 = vsyncadd [#allocation6], %s189
          %s191 = sshll.u32 [#allocation7], 4
          %s192 = int_to_ptr.vmem [resolvable:$true] %s191
          %197 = dma.hbm_to_vmem [thread:$0]  %s3, 1024, %s192, [#allocation6], 64, 64, 4
        $region24: #{tpu_custom_call.1} parent=11 // pred_fallthru
          _
        // Predicated region
        $region25: #{tpu_custom_call.1} parent=11 // pred_check
          %p198 = pneg %p128
        $region26: #{tpu_custom_call.1} parent=11 // pred_check_branch
          %200 = sbr.rel (%p198) target = $region28
        $region27: #{tpu_custom_call.1} parent=11 // pred_region
          _
        $region28: #{tpu_custom_call.1} parent=11 // pred_fallthru
          _
      $region12: #{tpu_custom_call.1} parent=5 // pred_fallthru
        _
      %p201 = scmp.lt.s32.totalorder %s18, 2
      // Predicated region
      $region29: #{tpu_custom_call.1} parent=5 // pred_check
        %p202 = pneg %p201
      $region30: #{tpu_custom_call.1} parent=5 // pred_check_branch
        %204 = sbr.rel (%p202) target = $region32
      $region31: #{tpu_custom_call.1} parent=5 // pred_region
        // Predicated region
        $region33: #{tpu_custom_call.1} parent=31 // pred_check
          %p205 = pneg %p38
        $region34: #{tpu_custom_call.1} parent=31 // pred_check_branch
          %207 = sbr.rel (%p205) target = $region36
        $region35: #{tpu_custom_call.1} parent=31 // pred_region
          %s208 = sand.u32 %s28, 1
          %s209 = scalar_lea.sflag [#allocation3], %s208
          %s210 = sand.u32 %s28, 1
          %s211 = smul.addr %s210, 32
          %s212 = scalar_lea.vmem [#allocation2], %s211
          %s214 = ssub.s32 512, 512
          %215 = vsyncadd %s209, %s214
          %s216 = smul.addr %s18, 8
          %s217 = smul.addr %s216, 64
          %s218 = scalar_lea.hbm %s0, %s217
          %s220 = sshll.u32 %s212, 4
          %s221 = int_to_ptr.vmem [resolvable:$true] %s220
          %223 = dma.hbm_to_vmem [thread:$0]  %s218, 512, %s221, %s209
        $region36: #{tpu_custom_call.1} parent=31 // pred_fallthru
          _
      $region32: #{tpu_custom_call.1} parent=5 // pred_fallthru
        _
      %p224 = scmp.le.s32.totalorder 1, %s18
      %p225 = scmp.lt.s32.totalorder %s18, 3
      %p226 = pnand %p224, %p225
      %p227 = pneg %p226
      // Predicated region
      $region37: #{tpu_custom_call.1} parent=5 // pred_check
        _
      $region38: #{tpu_custom_call.1} parent=5 // pred_check_branch
        %229 = sbr.rel (%p226) target = $region40
      $region39: #{tpu_custom_call.1} parent=5 // pred_region
        %s230 = ssub.s32 %s18, 1
        %s231 = sand.u32 %s31, 1
        %s232 = scalar_lea.sflag [#allocation3], %s231
        %s233 = sand.u32 %s31, 1
        %s234 = smul.addr %s233, 32
        %s235 = scalar_lea.vmem [#allocation2], %s234
        // Predicated region
        $region41: #{tpu_custom_call.1} parent=39 // pred_check
          %p236 = pneg %p44
        $region42: #{tpu_custom_call.1} parent=39 // pred_check_branch
          %238 = sbr.rel (%p236) target = $region44
        $region43: #{tpu_custom_call.1} parent=39 // pred_region
          %239 = dma.done %s232, 512
        $region44: #{tpu_custom_call.1} parent=39 // pred_fallthru
          _
        // Predicated region
        $region45: #{tpu_custom_call.1} parent=39 // pred_check
          %p240 = pneg %p65
        $region46: #{tpu_custom_call.1} parent=39 // pred_check_branch
          %242 = sbr.rel (%p240) target = $region48
        $region47: #{tpu_custom_call.1} parent=39 // pred_region
          %243 = dma.done [#allocation6], 8000
        $region48: #{tpu_custom_call.1} parent=39 // pred_fallthru
          _
        // Predicated region
        $region49: #{tpu_custom_call.1} parent=39 // pred_check
          %p244 = pneg %p107
        $region50: #{tpu_custom_call.1} parent=39 // pred_check_branch
          %246 = sbr.rel (%p244) target = $region52
        $region51: #{tpu_custom_call.1} parent=39 // pred_region
          %247 = dma.done [#allocation6], 1024
        $region52: #{tpu_custom_call.1} parent=39 // pred_fallthru
          _
        %s248 = sand.u32 %s31, 1
        %s249 = scalar_lea.sflag [#allocation3], %s248
        %s250 = sand.u32 %s31, 1
        %s251 = smul.addr %s250, 32
        %s252 = scalar_lea.vmem [#allocation2], %s251
        %p253 = pneg %p44
        %p254 = pneg %p41
        %p255 = pneg %p65
        %p256 = pneg %p62
        %p257 = pneg %p86
        %p258 = pneg %p83
        %p259 = pneg %p107
        %p260 = pneg %p104
        %p261 = pneg %p128
        %p262 = pneg %p125
        %p263 = pneg %p154
        %p264 = pneg %p151
        %s265 = sand.u32 %s141, 1
        %s266 = scalar_lea.sflag [#allocation4], %s265
        %s267 = sand.u32 %s141, 1
        %s268 = smul.addr %s267, 8
        %s269 = scalar_lea.vmem [#allocation8], %s268
        %v271 = vld [vmem:[%s235] sm:$0xff]
        %v272 = vld [vmem:[%s235 + $0x8] sm:$0xff]
        %v273 = vld [vmem:[%s235 + $0x10] sm:$0xff]
        %v274 = vld [vmem:[%s235 + $0x18] sm:$0xff]
        %v275 = vld [vmem:[#allocation5] sm:$0xf]
        %v276 = vld [vmem:[#allocation5 + $0x4] sm:$0xf]
        %v277 = vld [vmem:[#allocation5 + $0x8] sm:$0xf]
        %v278 = vld [vmem:[#allocation5 + $0xc] sm:$0xf]
        %v279 = vld [vmem:[#allocation5 + $0x10] sm:$0xf]
        %v280 = vld [vmem:[#allocation5 + $0x14] sm:$0xf]
        %v281 = vld [vmem:[#allocation5 + $0x18] sm:$0xf]
        %v282 = vld [vmem:[#allocation5 + $0x1c] sm:$0xf]
        %v283 = vld [vmem:[#allocation5 + $0x20] sm:$0xf]
        %v284 = vld [vmem:[#allocation5 + $0x24] sm:$0xf]
        %v285 = vld [vmem:[#allocation5 + $0x28] sm:$0xf]
        %v286 = vld [vmem:[#allocation5 + $0x2c] sm:$0xf]
        %v287 = vld [vmem:[#allocation5 + $0x30] sm:$0xf]
        %v288 = vld [vmem:[#allocation5 + $0x34] sm:$0xf]
        %v289 = vld [vmem:[#allocation5 + $0x38] sm:$0xf]
        %v290 = vld [vmem:[#allocation5 + $0x3c] sm:$0xf]
        %v291 = vld [vmem:[#allocation5 + $0x40] sm:$0xf]
        %v292 = vld [vmem:[#allocation5 + $0x44] sm:$0xf]
        %v293 = vld [vmem:[#allocation5 + $0x48] sm:$0xf]
        %v294 = vld [vmem:[#allocation5 + $0x4c] sm:$0xf]
        %v295 = vld [vmem:[#allocation5 + $0x50] sm:$0xf]
        %v296 = vld [vmem:[#allocation5 + $0x54] sm:$0xf]
        %v297 = vld [vmem:[#allocation5 + $0x58] sm:$0xf]
        %v298 = vld [vmem:[#allocation5 + $0x5c] sm:$0xf]
        %v299 = vld [vmem:[#allocation5 + $0x60] sm:$0xf]
        %v300 = vld [vmem:[#allocation5 + $0x64] sm:$0xf]
        %v301 = vld [vmem:[#allocation5 + $0x68] sm:$0xf]
        %v302 = vld [vmem:[#allocation5 + $0x6c] sm:$0xf]
        %v303 = vld [vmem:[#allocation5 + $0x70] sm:$0xf]
        %v304 = vld [vmem:[#allocation5 + $0x74] sm:$0xf]
        %v305 = vld [vmem:[#allocation5 + $0x78] sm:$0xf]
        %v306 = vld [vmem:[#allocation5 + $0x7c] sm:$0xf]
        %v307 = vld [vmem:[#allocation5 + $0x80] sm:$0xf]
        %v308 = vld [vmem:[#allocation5 + $0x84] sm:$0xf]
        %v309 = vld [vmem:[#allocation5 + $0x88] sm:$0xf]
        %v310 = vld [vmem:[#allocation5 + $0x8c] sm:$0xf]
        %v311 = vld [vmem:[#allocation5 + $0x90] sm:$0xf]
        %v312 = vld [vmem:[#allocation5 + $0x94] sm:$0xf]
        %v313 = vld [vmem:[#allocation5 + $0x98] sm:$0xf]
        %v314 = vld [vmem:[#allocation5 + $0x9c] sm:$0xf]
        %v315 = vld [vmem:[#allocation5 + $0xa0] sm:$0xf]
        %v316 = vld [vmem:[#allocation5 + $0xa4] sm:$0xf]
        %v317 = vld [vmem:[#allocation5 + $0xa8] sm:$0xf]
        %v318 = vld [vmem:[#allocation5 + $0xac] sm:$0xf]
        %v319 = vld [vmem:[#allocation5 + $0xb0] sm:$0xf]
        %v320 = vld [vmem:[#allocation5 + $0xb4] sm:$0xf]
        %v321 = vld [vmem:[#allocation5 + $0xb8] sm:$0xf]
        %v322 = vld [vmem:[#allocation5 + $0xbc] sm:$0xf]
        %v323 = vld [vmem:[#allocation5 + $0xc0] sm:$0xf]
        %v324 = vld [vmem:[#allocation5 + $0xc4] sm:$0xf]
        %v325 = vld [vmem:[#allocation5 + $0xc8] sm:$0xf]
        %v326 = vld [vmem:[#allocation5 + $0xcc] sm:$0xf]
        %v327 = vld [vmem:[#allocation5 + $0xd0] sm:$0xf]
        %v328 = vld [vmem:[#allocation5 + $0xd4] sm:$0xf]
        %v329 = vld [vmem:[#allocation5 + $0xd8] sm:$0xf]
        %v330 = vld [vmem:[#allocation5 + $0xdc] sm:$0xf]
        %v331 = vld [vmem:[#allocation5 + $0xe0] sm:$0xf]
        %v332 = vld [vmem:[#allocation5 + $0xe4] sm:$0xf]
        %v333 = vld [vmem:[#allocation5 + $0xe8] sm:$0xf]
        %v334 = vld [vmem:[#allocation5 + $0xec] sm:$0xf]
        %v335 = vld [vmem:[#allocation5 + $0xf0] sm:$0xf]
        %v336 = vld [vmem:[#allocation5 + $0xf4] sm:$0xf]
        %v337 = vld [vmem:[#allocation5 + $0xf8] sm:$0xf]
        %v338 = vld [vmem:[#allocation5 + $0xfc] sm:$0xf]
        %v339 = vld [vmem:[#allocation5 + $0x100] sm:$0xf]
        %v340 = vld [vmem:[#allocation5 + $0x104] sm:$0xf]
        %v341 = vld [vmem:[#allocation5 + $0x108] sm:$0xf]
        %v342 = vld [vmem:[#allocation5 + $0x10c] sm:$0xf]
        %v343 = vld [vmem:[#allocation5 + $0x110] sm:$0xf]
        %v344 = vld [vmem:[#allocation5 + $0x114] sm:$0xf]
        %v345 = vld [vmem:[#allocation5 + $0x118] sm:$0xf]
        %v346 = vld [vmem:[#allocation5 + $0x11c] sm:$0xf]
        %v347 = vld [vmem:[#allocation5 + $0x120] sm:$0xf]
        %v348 = vld [vmem:[#allocation5 + $0x124] sm:$0xf]
        %v349 = vld [vmem:[#allocation5 + $0x128] sm:$0xf]
        %v350 = vld [vmem:[#allocation5 + $0x12c] sm:$0xf]
        %v351 = vld [vmem:[#allocation5 + $0x130] sm:$0xf]
        %v352 = vld [vmem:[#allocation5 + $0x134] sm:$0xf]
        %v353 = vld [vmem:[#allocation5 + $0x138] sm:$0xf]
        %v354 = vld [vmem:[#allocation5 + $0x13c] sm:$0xf]
        %v355 = vld [vmem:[#allocation5 + $0x140] sm:$0xf]
        %v356 = vld [vmem:[#allocation5 + $0x144] sm:$0xf]
        %v357 = vld [vmem:[#allocation5 + $0x148] sm:$0xf]
        %v358 = vld [vmem:[#allocation5 + $0x14c] sm:$0xf]
        %v359 = vld [vmem:[#allocation5 + $0x150] sm:$0xf]
        %v360 = vld [vmem:[#allocation5 + $0x154] sm:$0xf]
        %v361 = vld [vmem:[#allocation5 + $0x158] sm:$0xf]
        %v362 = vld [vmem:[#allocation5 + $0x15c] sm:$0xf]
        %v363 = vld [vmem:[#allocation5 + $0x160] sm:$0xf]
        %v364 = vld [vmem:[#allocation5 + $0x164] sm:$0xf]
        %v365 = vld [vmem:[#allocation5 + $0x168] sm:$0xf]
        %v366 = vld [vmem:[#allocation5 + $0x16c] sm:$0xf]
        %v367 = vld [vmem:[#allocation5 + $0x170] sm:$0xf]
        %v368 = vld [vmem:[#allocation5 + $0x174] sm:$0xf]
        %v369 = vld [vmem:[#allocation5 + $0x178] sm:$0xf]
        %v370 = vld [vmem:[#allocation5 + $0x17c] sm:$0xf]
        %v371 = vld [vmem:[#allocation5 + $0x180] sm:$0xf]
        %v372 = vld [vmem:[#allocation5 + $0x184] sm:$0xf]
        %v373 = vld [vmem:[#allocation5 + $0x188] sm:$0xf]
        %v374 = vld [vmem:[#allocation5 + $0x18c] sm:$0xf]
        %v375 = vld [vmem:[#allocation5 + $0x190] sm:$0xf]
        %v376 = vld [vmem:[#allocation5 + $0x194] sm:$0xf]
        %v377 = vld [vmem:[#allocation5 + $0x198] sm:$0xf]
        %v378 = vld [vmem:[#allocation5 + $0x19c] sm:$0xf]
        %v379 = vld [vmem:[#allocation5 + $0x1a0] sm:$0xf]
        %v380 = vld [vmem:[#allocation5 + $0x1a4] sm:$0xf]
        %v381 = vld [vmem:[#allocation5 + $0x1a8] sm:$0xf]
        %v382 = vld [vmem:[#allocation5 + $0x1ac] sm:$0xf]
        %v383 = vld [vmem:[#allocation5 + $0x1b0] sm:$0xf]
        %v384 = vld [vmem:[#allocation5 + $0x1b4] sm:$0xf]
        %v385 = vld [vmem:[#allocation5 + $0x1b8] sm:$0xf]
        %v386 = vld [vmem:[#allocation5 + $0x1bc] sm:$0xf]
        %v387 = vld [vmem:[#allocation5 + $0x1c0] sm:$0xf]
        %v388 = vld [vmem:[#allocation5 + $0x1c4] sm:$0xf]
        %v389 = vld [vmem:[#allocation5 + $0x1c8] sm:$0xf]
        %v390 = vld [vmem:[#allocation5 + $0x1cc] sm:$0xf]
        %v391 = vld [vmem:[#allocation5 + $0x1d0] sm:$0xf]
        %v392 = vld [vmem:[#allocation5 + $0x1d4] sm:$0xf]
        %v393 = vld [vmem:[#allocation5 + $0x1d8] sm:$0xf]
        %v394 = vld [vmem:[#allocation5 + $0x1dc] sm:$0xf]
        %v395 = vld [vmem:[#allocation5 + $0x1e0] sm:$0xf]
        %v396 = vld [vmem:[#allocation5 + $0x1e4] sm:$0xf]
        %v397 = vld [vmem:[#allocation5 + $0x1e8] sm:$0xf]
        %v398 = vld [vmem:[#allocation5 + $0x1ec] sm:$0xf]
        %v399 = vld [vmem:[#allocation5 + $0x1f0] sm:$0xf]
        %v400 = vld [vmem:[%s2] sm:$0x1]
        %v402 = vlaneseq
        %v403 = vshrl.u32 %v402, 7
        %v404 = vsub.s32 0, %v403
        %v405 = vrot.slane %v400, %v404
        %v411 = vunpack.c.l.b16 %v271
        %v412 = vunpack.c.h.b16 %v271
        %v413 = vunpack.c.l.b16 %v272
        %v414 = vunpack.c.h.b16 %v272
        %v415 = vunpack.c.l.b16 %v273
        %v416 = vunpack.c.h.b16 %v273
        %v417 = vunpack.c.l.b16 %v274
        %v418 = vunpack.c.h.b16 %v274
        %v419 = vpack.c.b16 %v411, %v411
        %v420 = vpack.c.b16 %v412, %v412
        %v421 = vpack.c.b16 %v413, %v413
        %v422 = vpack.c.b16 %v414, %v414
        %v423 = vpack.c.b16 %v415, %v415
        %v424 = vpack.c.b16 %v416, %v416
        %v425 = vpack.c.b16 %v417, %v417
        %v426 = vpack.c.b16 %v418, %v418
        %v559 = vunpack.c.l.b16 %v275
        %v560 = vunpack.c.l.b16 %v276
        %v561 = vunpack.c.l.b16 %v277
        %v562 = vunpack.c.l.b16 %v278
        %v563 = vunpack.c.l.b16 %v279
        %v564 = vunpack.c.l.b16 %v280
        %v565 = vunpack.c.l.b16 %v281
        %v566 = vunpack.c.l.b16 %v282
        %v567 = vunpack.c.l.b16 %v283
        %v568 = vunpack.c.l.b16 %v284
        %v569 = vunpack.c.l.b16 %v285
        %v570 = vunpack.c.l.b16 %v286
        %v571 = vunpack.c.l.b16 %v287
        %v572 = vunpack.c.l.b16 %v288
        %v573 = vunpack.c.l.b16 %v289
        %v574 = vunpack.c.l.b16 %v290
        %v575 = vunpack.c.l.b16 %v291
        %v576 = vunpack.c.l.b16 %v292
        %v577 = vunpack.c.l.b16 %v293
        %v578 = vunpack.c.l.b16 %v294
        %v579 = vunpack.c.l.b16 %v295
        %v580 = vunpack.c.l.b16 %v296
        %v581 = vunpack.c.l.b16 %v297
        %v582 = vunpack.c.l.b16 %v298
        %v583 = vunpack.c.l.b16 %v299
        %v584 = vunpack.c.l.b16 %v300
        %v585 = vunpack.c.l.b16 %v301
        %v586 = vunpack.c.l.b16 %v302
        %v587 = vunpack.c.l.b16 %v303
        %v588 = vunpack.c.l.b16 %v304
        %v589 = vunpack.c.l.b16 %v305
        %v590 = vunpack.c.l.b16 %v306
        %v591 = vunpack.c.l.b16 %v307
        %v592 = vunpack.c.l.b16 %v308
        %v593 = vunpack.c.l.b16 %v309
        %v594 = vunpack.c.l.b16 %v310
        %v595 = vunpack.c.l.b16 %v311
        %v596 = vunpack.c.l.b16 %v312
        %v597 = vunpack.c.l.b16 %v313
        %v598 = vunpack.c.l.b16 %v314
        %v599 = vunpack.c.l.b16 %v315
        %v600 = vunpack.c.l.b16 %v316
        %v601 = vunpack.c.l.b16 %v317
        %v602 = vunpack.c.l.b16 %v318
        %v603 = vunpack.c.l.b16 %v319
        %v604 = vunpack.c.l.b16 %v320
        %v605 = vunpack.c.l.b16 %v321
        %v606 = vunpack.c.l.b16 %v322
        %v607 = vunpack.c.l.b16 %v323
        %v608 = vunpack.c.l.b16 %v324
        %v609 = vunpack.c.l.b16 %v325
        %v610 = vunpack.c.l.b16 %v326
        %v611 = vunpack.c.l.b16 %v327
        %v612 = vunpack.c.l.b16 %v328
        %v613 = vunpack.c.l.b16 %v329
        %v614 = vunpack.c.l.b16 %v330
        %v615 = vunpack.c.l.b16 %v331
        %v616 = vunpack.c.l.b16 %v332
        %v617 = vunpack.c.l.b16 %v333
        %v618 = vunpack.c.l.b16 %v334
        %v619 = vunpack.c.l.b16 %v335
        %v620 = vunpack.c.l.b16 %v336
        %v621 = vunpack.c.l.b16 %v337
        %v622 = vunpack.c.l.b16 %v338
        %v623 = vunpack.c.l.b16 %v339
        %v624 = vunpack.c.l.b16 %v340
        %v625 = vunpack.c.l.b16 %v341
        %v626 = vunpack.c.l.b16 %v342
        %v627 = vunpack.c.l.b16 %v343
        %v628 = vunpack.c.l.b16 %v344
        %v629 = vunpack.c.l.b16 %v345
        %v630 = vunpack.c.l.b16 %v346
        %v631 = vunpack.c.l.b16 %v347
        %v632 = vunpack.c.l.b16 %v348
        %v633 = vunpack.c.l.b16 %v349
        %v634 = vunpack.c.l.b16 %v350
        %v635 = vunpack.c.l.b16 %v351
        %v636 = vunpack.c.l.b16 %v352
        %v637 = vunpack.c.l.b16 %v353
        %v638 = vunpack.c.l.b16 %v354
        %v639 = vunpack.c.l.b16 %v355
        %v640 = vunpack.c.l.b16 %v356
        %v641 = vunpack.c.l.b16 %v357
        %v642 = vunpack.c.l.b16 %v358
        %v643 = vunpack.c.l.b16 %v359
        %v644 = vunpack.c.l.b16 %v360
        %v645 = vunpack.c.l.b16 %v361
        %v646 = vunpack.c.l.b16 %v362
        %v647 = vunpack.c.l.b16 %v363
        %v648 = vunpack.c.l.b16 %v364
        %v649 = vunpack.c.l.b16 %v365
        %v650 = vunpack.c.l.b16 %v366
        %v651 = vunpack.c.l.b16 %v367
        %v652 = vunpack.c.l.b16 %v368
        %v653 = vunpack.c.l.b16 %v369
        %v654 = vunpack.c.l.b16 %v370
        %v655 = vunpack.c.l.b16 %v371
        %v656 = vunpack.c.l.b16 %v372
        %v657 = vunpack.c.l.b16 %v373
        %v658 = vunpack.c.l.b16 %v374
        %v659 = vunpack.c.l.b16 %v375
        %v660 = vunpack.c.l.b16 %v376
        %v661 = vunpack.c.l.b16 %v377
        %v662 = vunpack.c.l.b16 %v378
        %v663 = vunpack.c.l.b16 %v379
        %v664 = vunpack.c.l.b16 %v380
        %v665 = vunpack.c.l.b16 %v381
        %v666 = vunpack.c.l.b16 %v382
        %v667 = vunpack.c.l.b16 %v383
        %v668 = vunpack.c.l.b16 %v384
        %v669 = vunpack.c.l.b16 %v385
        %v670 = vunpack.c.l.b16 %v386
        %v671 = vunpack.c.l.b16 %v387
        %v672 = vunpack.c.l.b16 %v388
        %v673 = vunpack.c.l.b16 %v389
        %v674 = vunpack.c.l.b16 %v390
        %v675 = vunpack.c.l.b16 %v391
        %v676 = vunpack.c.l.b16 %v392
        %v677 = vunpack.c.l.b16 %v393
        %v678 = vunpack.c.l.b16 %v394
        %v679 = vunpack.c.l.b16 %v395
        %v680 = vunpack.c.l.b16 %v396
        %v681 = vunpack.c.l.b16 %v397
        %v682 = vunpack.c.l.b16 %v398
        %v683 = vunpack.c.l.b16 %v399
        %v684 = vpack.c.b16 %v560, %v559
        %v685 = vpack.c.b16 %v562, %v561
        %v686 = vpack.c.b16 %v564, %v563
        %v687 = vpack.c.b16 %v566, %v565
        %v688 = vpack.c.b16 %v568, %v567
        %v689 = vpack.c.b16 %v570, %v569
        %v690 = vpack.c.b16 %v572, %v571
        %v691 = vpack.c.b16 %v574, %v573
        %v692 = vpack.c.b16 %v576, %v575
        %v693 = vpack.c.b16 %v578, %v577
        %v694 = vpack.c.b16 %v580, %v579
        %v695 = vpack.c.b16 %v582, %v581
        %v696 = vpack.c.b16 %v584, %v583
        %v697 = vpack.c.b16 %v586, %v585
        %v698 = vpack.c.b16 %v588, %v587
        %v699 = vpack.c.b16 %v590, %v589
        %v700 = vpack.c.b16 %v592, %v591
        %v701 = vpack.c.b16 %v594, %v593
        %v702 = vpack.c.b16 %v596, %v595
        %v703 = vpack.c.b16 %v598, %v597
        %v704 = vpack.c.b16 %v600, %v599
        %v705 = vpack.c.b16 %v602, %v601
        %v706 = vpack.c.b16 %v604, %v603
        %v707 = vpack.c.b16 %v606, %v605
        %v708 = vpack.c.b16 %v608, %v607
        %v709 = vpack.c.b16 %v610, %v609
        %v710 = vpack.c.b16 %v612, %v611
        %v711 = vpack.c.b16 %v614, %v613
        %v712 = vpack.c.b16 %v616, %v615
        %v713 = vpack.c.b16 %v618, %v617
        %v714 = vpack.c.b16 %v620, %v619
        %v715 = vpack.c.b16 %v622, %v621
        %v716 = vpack.c.b16 %v624, %v623
        %v717 = vpack.c.b16 %v626, %v625
        %v718 = vpack.c.b16 %v628, %v627
        %v719 = vpack.c.b16 %v630, %v629
        %v720 = vpack.c.b16 %v632, %v631
        %v721 = vpack.c.b16 %v634, %v633
        %v722 = vpack.c.b16 %v636, %v635
        %v723 = vpack.c.b16 %v638, %v637
        %v724 = vpack.c.b16 %v640, %v639
        %v725 = vpack.c.b16 %v642, %v641
        %v726 = vpack.c.b16 %v644, %v643
        %v727 = vpack.c.b16 %v646, %v645
        %v728 = vpack.c.b16 %v648, %v647
        %v729 = vpack.c.b16 %v650, %v649
        %v730 = vpack.c.b16 %v652, %v651
        %v731 = vpack.c.b16 %v654, %v653
        %v732 = vpack.c.b16 %v656, %v655
        %v733 = vpack.c.b16 %v658, %v657
        %v734 = vpack.c.b16 %v660, %v659
        %v735 = vpack.c.b16 %v662, %v661
        %v736 = vpack.c.b16 %v664, %v663
        %v737 = vpack.c.b16 %v666, %v665
        %v738 = vpack.c.b16 %v668, %v667
        %v739 = vpack.c.b16 %v670, %v669
        %v740 = vpack.c.b16 %v672, %v671
        %v741 = vpack.c.b16 %v674, %v673
        %v742 = vpack.c.b16 %v676, %v675
        %v743 = vpack.c.b16 %v678, %v677
        %v744 = vpack.c.b16 %v680, %v679
        %v745 = vpack.c.b16 %v682, %v681
        %v746 = vpack.c.b16 %v683, %v683
        %vm809 = vcmask 850944
        %v811 = vsel %vm809, %v426, 0
        %vm813 = vcmask 1043456
        %v815 = vsel %vm813, %v746, 0
        %817 = vmatprep.subr.bf16.mxu0 0
        %818 = vmatpush1.bf16.msra.mxu0 %v684
        %819 = vmatprep.subr.bf16.mxu0 0
        %820 = vmatpush1.bf16.msra.mxu0 %v685
        %821 = vmatprep.subr.bf16.mxu0 0
        %822 = vmatpush1.bf16.msra.mxu0 %v686
        %823 = vmatprep.subr.bf16.mxu0 0
        %824 = vmatpush1.bf16.msra.mxu0 %v687
        %825 = vmatprep.subr.bf16.mxu0 0
        %826 = vmatpush1.bf16.msra.mxu0 %v688
        %827 = vmatprep.subr.bf16.mxu0 0
        %828 = vmatpush1.bf16.msra.mxu0 %v689
        %829 = vmatprep.subr.bf16.mxu0 0
        %830 = vmatpush1.bf16.msra.mxu0 %v690
        %831 = vmatprep.subr.bf16.mxu0 0
        %832 = vmatpush1.bf16.msra.mxu0 %v691
        %833 = vmatprep.subr.bf16.mxu0 0
        %834 = vmatpush1.bf16.msra.mxu0 %v692
        %835 = vmatprep.subr.bf16.mxu0 0
        %836 = vmatpush1.bf16.msra.mxu0 %v693
        %837 = vmatprep.subr.bf16.mxu0 0
        %838 = vmatpush1.bf16.msra.mxu0 %v694
        %839 = vmatprep.subr.bf16.mxu0 0
        %840 = vmatpush1.bf16.msra.mxu0 %v695
        %841 = vmatprep.subr.bf16.mxu0 0
        %842 = vmatpush1.bf16.msra.mxu0 %v696
        %843 = vmatprep.subr.bf16.mxu0 0
        %844 = vmatpush1.bf16.msra.mxu0 %v697
        %845 = vmatprep.subr.bf16.mxu0 0
        %846 = vmatpush1.bf16.msra.mxu0 %v698
        %847 = vmatprep.subr.bf16.mxu0 0
        %848 = vmatpush1.bf16.msra.mxu0 %v699
        %849 = vmatprep.mubr.bf16.mxu0 %v420
        %850 = vmatmul.mubr.bf16.gmra.mrb[0].mxu0 %v419
        %v851 = vpop.f32.mrb[0].mxu0
        %v852 = vadd.f32 %v405, %v851
        %v853 = vpop.f32.mrb[0].mxu0
        %v854 = vpop.f32.mrb[0].mxu0
        %v855 = vpop.f32.mrb[0].mxu0
        %856 = vdwg.mxu0
        %857 = vmatprep.subr.bf16.mxu0 0
        %858 = vmatpush1.bf16.msra.mxu0 %v700
        %859 = vmatprep.subr.bf16.mxu0 0
        %860 = vmatpush1.bf16.msra.mxu0 %v701
        %861 = vmatprep.subr.bf16.mxu0 0
        %862 = vmatpush1.bf16.msra.mxu0 %v702
        %863 = vmatprep.subr.bf16.mxu0 0
        %864 = vmatpush1.bf16.msra.mxu0 %v703
        %865 = vmatprep.subr.bf16.mxu0 0
        %866 = vmatpush1.bf16.msra.mxu0 %v704
        %867 = vmatprep.subr.bf16.mxu0 0
        %868 = vmatpush1.bf16.msra.mxu0 %v705
        %869 = vmatprep.subr.bf16.mxu0 0
        %870 = vmatpush1.bf16.msra.mxu0 %v706
        %871 = vmatprep.subr.bf16.mxu0 0
        %872 = vmatpush1.bf16.msra.mxu0 %v707
        %873 = vmatprep.subr.bf16.mxu0 0
        %874 = vmatpush1.bf16.msra.mxu0 %v708
        %875 = vmatprep.subr.bf16.mxu0 0
        %876 = vmatpush1.bf16.msra.mxu0 %v709
        %877 = vmatprep.subr.bf16.mxu0 0
        %878 = vmatpush1.bf16.msra.mxu0 %v710
        %879 = vmatprep.subr.bf16.mxu0 0
        %880 = vmatpush1.bf16.msra.mxu0 %v711
        %881 = vmatprep.subr.bf16.mxu0 0
        %882 = vmatpush1.bf16.msra.mxu0 %v712
        %883 = vmatprep.subr.bf16.mxu0 0
        %884 = vmatpush1.bf16.msra.mxu0 %v713
        %885 = vmatprep.subr.bf16.mxu0 0
        %886 = vmatpush1.bf16.msra.mxu0 %v714
        %887 = vmatprep.subr.bf16.mxu0 0
        %888 = vmatpush1.bf16.msra.mxu0 %v715
        %889 = vmatprep.mubr.bf16.mxu0 %v422
        %890 = vmatmul.mubr.bf16.gmra.mrb[0].mxu0 %v421
        %v891 = vpop.f32.mrb[0].mxu0
        %v892 = vadd.f32 %v852, %v891
        %v893 = vpop.f32.mrb[0].mxu0
        %v894 = vpop.f32.mrb[0].mxu0
        %v895 = vpop.f32.mrb[0].mxu0
        %896 = vdwg.mxu0
        %897 = vmatprep.subr.bf16.mxu0 0
        %898 = vmatpush1.bf16.msra.mxu0 %v716
        %899 = vmatprep.subr.bf16.mxu0 0
        %900 = vmatpush1.bf16.msra.mxu0 %v717
        %901 = vmatprep.subr.bf16.mxu0 0
        %902 = vmatpush1.bf16.msra.mxu0 %v718
        %903 = vmatprep.subr.bf16.mxu0 0
        %904 = vmatpush1.bf16.msra.mxu0 %v719
        %905 = vmatprep.subr.bf16.mxu0 0
        %906 = vmatpush1.bf16.msra.mxu0 %v720
        %907 = vmatprep.subr.bf16.mxu0 0
        %908 = vmatpush1.bf16.msra.mxu0 %v721
        %909 = vmatprep.subr.bf16.mxu0 0
        %910 = vmatpush1.bf16.msra.mxu0 %v722
        %911 = vmatprep.subr.bf16.mxu0 0
        %912 = vmatpush1.bf16.msra.mxu0 %v723
        %913 = vmatprep.subr.bf16.mxu0 0
        %914 = vmatpush1.bf16.msra.mxu0 %v724
        %915 = vmatprep.subr.bf16.mxu0 0
        %916 = vmatpush1.bf16.msra.mxu0 %v725
        %917 = vmatprep.subr.bf16.mxu0 0
        %918 = vmatpush1.bf16.msra.mxu0 %v726
        %919 = vmatprep.subr.bf16.mxu0 0
        %920 = vmatpush1.bf16.msra.mxu0 %v727
        %921 = vmatprep.subr.bf16.mxu0 0
        %922 = vmatpush1.bf16.msra.mxu0 %v728
        %923 = vmatprep.subr.bf16.mxu0 0
        %924 = vmatpush1.bf16.msra.mxu0 %v729
        %925 = vmatprep.subr.bf16.mxu0 0
        %926 = vmatpush1.bf16.msra.mxu0 %v730
        %927 = vmatprep.subr.bf16.mxu0 0
        %928 = vmatpush1.bf16.msra.mxu0 %v731
        %929 = vmatprep.mubr.bf16.mxu0 %v424
        %930 = vmatmul.mubr.bf16.gmra.mrb[0].mxu0 %v423
        %v931 = vpop.f32.mrb[0].mxu0
        %v932 = vadd.f32 %v892, %v931
        %v933 = vpop.f32.mrb[0].mxu0
        %v934 = vpop.f32.mrb[0].mxu0
        %v935 = vpop.f32.mrb[0].mxu0
        %936 = vdwg.mxu0
        %937 = vmatprep.subr.bf16.mxu0 0
        %938 = vmatpush1.bf16.msra.mxu0 %v732
        %939 = vmatprep.subr.bf16.mxu0 0
        %940 = vmatpush1.bf16.msra.mxu0 %v733
        %941 = vmatprep.subr.bf16.mxu0 0
        %942 = vmatpush1.bf16.msra.mxu0 %v734
        %943 = vmatprep.subr.bf16.mxu0 0
        %944 = vmatpush1.bf16.msra.mxu0 %v735
        %945 = vmatprep.subr.bf16.mxu0 0
        %946 = vmatpush1.bf16.msra.mxu0 %v736
        %947 = vmatprep.subr.bf16.mxu0 0
        %948 = vmatpush1.bf16.msra.mxu0 %v737
        %949 = vmatprep.subr.bf16.mxu0 0
        %950 = vmatpush1.bf16.msra.mxu0 %v738
        %951 = vmatprep.subr.bf16.mxu0 0
        %952 = vmatpush1.bf16.msra.mxu0 %v739
        %953 = vmatprep.subr.bf16.mxu0 0
        %954 = vmatpush1.bf16.msra.mxu0 %v740
        %955 = vmatprep.subr.bf16.mxu0 0
        %956 = vmatpush1.bf16.msra.mxu0 %v741
        %957 = vmatprep.subr.bf16.mxu0 0
        %958 = vmatpush1.bf16.msra.mxu0 %v742
        %959 = vmatprep.subr.bf16.mxu0 0
        %960 = vmatpush1.bf16.msra.mxu0 %v743
        %961 = vmatprep.subr.bf16.mxu0 0
        %962 = vmatpush1.bf16.msra.mxu0 %v744
        %963 = vmatprep.subr.bf16.mxu0 0
        %964 = vmatpush1.bf16.msra.mxu0 %v745
        %965 = vmatprep.subr.bf16.mxu0 0
        %966 = vmatpush1.bf16.msra.mxu0 %v815
        %967 = vmatprep.subr.bf16.mxu0 0
        %968 = vmatpush1.bf16.msra.mxu0 0
        %969 = vmatprep.mubr.bf16.mxu0 %v811
        %970 = vmatmul.mubr.bf16.gmra.mrb[0].mxu0 %v425
        %v971 = vpop.f32.mrb[0].mxu0
        %v972 = vadd.f32 %v932, %v971
        %v973 = vpop.f32.mrb[0].mxu0
        %v974 = vpop.f32.mrb[0].mxu0
        %v975 = vpop.f32.mrb[0].mxu0
        %976 = vdwg.mxu0
        %v977 = vmax.f32 %v972, 0.0
        %v978 = vpack.c.bf16 %v977, %v977
        %v979 = vld [vmem:[#allocation7] sm:$0xf]
        %v980 = vld [vmem:[#allocation7 + $0x4] sm:$0xf]
        %v981 = vld [vmem:[#allocation7 + $0x8] sm:$0xf]
        %v982 = vld [vmem:[#allocation7 + $0xc] sm:$0xf]
        %v983 = vld [vmem:[#allocation7 + $0x10] sm:$0xf]
        %v984 = vld [vmem:[#allocation7 + $0x14] sm:$0xf]
        %v985 = vld [vmem:[#allocation7 + $0x18] sm:$0xf]
        %v986 = vld [vmem:[#allocation7 + $0x1c] sm:$0xf]
        %v987 = vld [vmem:[#allocation7 + $0x20] sm:$0xf]
        %v988 = vld [vmem:[#allocation7 + $0x24] sm:$0xf]
        %v989 = vld [vmem:[#allocation7 + $0x28] sm:$0xf]
        %v990 = vld [vmem:[#allocation7 + $0x2c] sm:$0xf]
        %v991 = vld [vmem:[#allocation7 + $0x30] sm:$0xf]
        %v992 = vld [vmem:[#allocation7 + $0x34] sm:$0xf]
        %v993 = vld [vmem:[#allocation7 + $0x38] sm:$0xf]
        %v994 = vld [vmem:[#allocation7 + $0x3c] sm:$0xf]
        %v995 = vld [vmem:[%s4] sm:$0x1]
        %v997 = vlaneseq
        %v998 = vshrl.u32 %v997, 7
        %v999 = vsub.s32 0, %v998
        %v1000 = vrot.slane %v995, %v999
        %v1018 = vunpack.c.l.b16 %v979
        %v1019 = vunpack.c.l.b16 %v980
        %v1020 = vunpack.c.l.b16 %v981
        %v1021 = vunpack.c.l.b16 %v982
        %v1022 = vunpack.c.l.b16 %v983
        %v1023 = vunpack.c.l.b16 %v984
        %v1024 = vunpack.c.l.b16 %v985
        %v1025 = vunpack.c.l.b16 %v986
        %v1026 = vunpack.c.l.b16 %v987
        %v1027 = vunpack.c.l.b16 %v988
        %v1028 = vunpack.c.l.b16 %v989
        %v1029 = vunpack.c.l.b16 %v990
        %v1030 = vunpack.c.l.b16 %v991
        %v1031 = vunpack.c.l.b16 %v992
        %v1032 = vunpack.c.l.b16 %v993
        %v1033 = vunpack.c.l.b16 %v994
        %v1034 = vpack.c.b16 %v1019, %v1018
        %v1035 = vpack.c.b16 %v1021, %v1020
        %v1036 = vpack.c.b16 %v1023, %v1022
        %v1037 = vpack.c.b16 %v1025, %v1024
        %v1038 = vpack.c.b16 %v1027, %v1026
        %v1039 = vpack.c.b16 %v1029, %v1028
        %v1040 = vpack.c.b16 %v1031, %v1030
        %v1041 = vpack.c.b16 %v1033, %v1032
        %1050 = vmatprep.subr.bf16.mxu0 0
        %1051 = vmatpush1.bf16.msra.mxu0 %v1034
        %1052 = vmatprep.subr.bf16.mxu0 0
        %1053 = vmatpush1.bf16.msra.mxu0 %v1035
        %1054 = vmatprep.subr.bf16.mxu0 0
        %1055 = vmatpush1.bf16.msra.mxu0 %v1036
        %1056 = vmatprep.subr.bf16.mxu0 0
        %1057 = vmatpush1.bf16.msra.mxu0 %v1037
        %1058 = vmatprep.subr.bf16.mxu0 0
        %1059 = vmatpush1.bf16.msra.mxu0 %v1038
        %1060 = vmatprep.subr.bf16.mxu0 0
        %1061 = vmatpush1.bf16.msra.mxu0 %v1039
        %1062 = vmatprep.subr.bf16.mxu0 0
        %1063 = vmatpush1.bf16.msra.mxu0 %v1040
        %1064 = vmatprep.subr.bf16.mxu0 0
        %1065 = vmatpush1.bf16.msra.mxu0 %v1041
        %1066 = vmatprep.subr.bf16.mxu0 0
        %1067 = vmatpush1.bf16.msra.mxu0 0
        %1068 = vmatprep.subr.bf16.mxu0 0
        %1069 = vmatpush1.bf16.msra.mxu0 0
        %1070 = vmatprep.subr.bf16.mxu0 0
        %1071 = vmatpush1.bf16.msra.mxu0 0
        %1072 = vmatprep.subr.bf16.mxu0 0
        %1073 = vmatpush1.bf16.msra.mxu0 0
        %1074 = vmatprep.subr.bf16.mxu0 0
        %1075 = vmatpush1.bf16.msra.mxu0 0
        %1076 = vmatprep.subr.bf16.mxu0 0
        %1077 = vmatpush1.bf16.msra.mxu0 0
        %1078 = vmatprep.subr.bf16.mxu0 0
        %1079 = vmatpush1.bf16.msra.mxu0 0
        %1080 = vmatprep.subr.bf16.mxu0 0
        %1081 = vmatpush1.bf16.msra.mxu0 0
        %1082 = vmatprep.mubr.bf16.mxu0 0
        %1083 = vmatmul.mubr.bf16.gmra.mrb[0].mxu0 %v978
        %v1084 = vpop.f32.mrb[0].mxu0
        %v1085 = vadd.f32 %v1000, %v1084
        %v1086 = vpop.f32.mrb[0].mxu0
        %v1087 = vpop.f32.mrb[0].mxu0
        %v1088 = vpop.f32.mrb[0].mxu0
        %1089 = vdwg.mxu0
        %vm1090 = vcmask 80896
        %1091 = vst.msk [vmem:[%s269] sm:$0xff] %vm1090, %v1085
        %s1092 = sand.u32 %s141, 1
        %s1093 = scalar_lea.sflag [#allocation4], %s1092
        %s1094 = sand.u32 %s141, 1
        %s1095 = smul.addr %s1094, 8
        %s1096 = scalar_lea.vmem [#allocation8], %s1095
        // Predicated region
        $region53: #{tpu_custom_call.1} parent=39 // pred_check
          %p1097 = pneg %p151
        $region54: #{tpu_custom_call.1} parent=39 // pred_check_branch
          %1099 = sbr.rel (%p1097) target = $region56
        $region55: #{tpu_custom_call.1} parent=39 // pred_region
          %s1101 = ssub.s32 128, 128
          %1102 = vsyncadd %s1093, %s1101
          %s1103 = smul.addr %s23, 128
          %s1104 = scalar_lea.hbm %s5, %s1103
          %s1106 = sshll.u32 %s1096, 4
          %s1107 = int_to_ptr.vmem [resolvable:$true] %s1106
          %1109 = dma.vmem_to_hbm [thread:$0]  %s1107, 128, %s1104, %s1093
        $region56: #{tpu_custom_call.1} parent=39 // pred_fallthru
          _
      $region40: #{tpu_custom_call.1} parent=5 // pred_fallthru
        _
      %p1110 = scmp.le.s32.totalorder 2, %s18
      // Predicated region
      $region57: #{tpu_custom_call.1} parent=5 // pred_check
        %p1111 = pneg %p1110
      $region58: #{tpu_custom_call.1} parent=5 // pred_check_branch
        %1113 = sbr.rel (%p1111) target = $region60
      $region59: #{tpu_custom_call.1} parent=5 // pred_region
        %s1114 = ssub.s32 %s18, 2
        // Predicated region
        $region61: #{tpu_custom_call.1} parent=59 // pred_check
          %p1115 = pneg %p157
        $region62: #{tpu_custom_call.1} parent=59 // pred_check_branch
          %1117 = sbr.rel (%p1115) target = $region64
        $region63: #{tpu_custom_call.1} parent=59 // pred_region
          %s1118 = sand.u32 %s142, 1
          %s1119 = scalar_lea.sflag [#allocation4], %s1118
          %s1120 = sand.u32 %s142, 1
          %s1121 = smul.addr %s1120, 8
          %s1122 = scalar_lea.vmem [#allocation8], %s1121
          %1123 = dma.done %s1119, 128
        $region64: #{tpu_custom_call.1} parent=59 // pred_fallthru
          _
      $region60: #{tpu_custom_call.1} parent=5 // pred_fallthru
        _
    $region6: #{tpu_custom_call.1} parent=1 // loop_footer
      %s22 = sadd.s32 1, %s18
    $region7: #{tpu_custom_call.1} parent=1 // loop_footer_branch
      %17 = sbr.rel target = $region3
    $region8: #{tpu_custom_call.1} parent=1 // loop_exit
      _
    %1124 = vsyncpa [#allocation3], 1
    %s1125 = scalar_lea.sflag [#allocation3], 1
    %1126 = vsyncpa %s1125, 1
    %1127 = vsyncpa [#allocation6], 1
    %1128 = vsyncpa [#allocation4], 1
    %s1129 = scalar_lea.sflag [#allocation4], 1
    %1130 = vsyncpa %s1129, 1

</llo_original>
